<compile_context>
chip_gen: v7x
topology: tpu7x:2x2x1
jax: 0.10.0
libtpu: 0.0.40
codegen_flags: <defaults>
</compile_context>

<pallas_src>
import jax
import jax.numpy as jnp
from jax.experimental import pallas as pl
from jax.experimental.pallas import tpu as pltpu


def regression_head_kernel(x_ref, w1_ref, b1_ref, w2_ref, b2_ref, o_ref):
    """Fused: out = tanh(x @ W1 + b1) @ W2 + b2 for one (tm, H) row tile.

    x_ref : [tm, H]  original dtype (streamed per grid step)
    w1_ref: [H, H]   bf16 (resident)  -- dense weight, [in, out]
    b1_ref: [1, H]   f32  (resident)
    w2_ref: [H, L]   bf16 (resident)  -- out_proj weight, [in, out]
    b2_ref: [1, L]   f32  (resident)
    o_ref : [tm, L]
    """
    x = x_ref[...].astype(w1_ref.dtype)            # VPU cast (free slot slack)
    h = jnp.dot(x, w1_ref[...], preferred_element_type=jnp.float32)
    h = jnp.tanh(h + b1_ref[...])                  # f32 bias + tanh (VPU/EUP)
    y = jnp.dot(h.astype(w2_ref.dtype), w2_ref[...],
                preferred_element_type=jnp.float32) + b2_ref[...]
    o_ref[...] = y.astype(o_ref.dtype)


def _round_up(a, b):
    return (a + b - 1) // b * b


def regression_head(features, w1, b1, w2, b2, *, tm=4096,
                    compute_dtype=jnp.bfloat16):
    """features: [B, T, H] -> [B, T, num_labels].

    w1: [H, H] (pre-transposed, [in, out]); b1: [H]
    w2: [H, L] (pre-transposed, [in, out]); b2: [L]
    """
    B, T, H = features.shape
    L = w2.shape[1]
    M = B * T

    # Row tile: multiple of 16 (bf16 sublane packing), capped at tm.
    tm_eff = min(tm, _round_up(M, 16))
    num_tiles = pl.cdiv(M, tm_eff)
    # v7x megacore: keep >= 2 grid steps (when M allows) so the "parallel"
    # M axis can be sharded across both TensorCores.
    if num_tiles < 2 and M > 16:
        tm_eff = _round_up(pl.cdiv(M, 2), 16)
        num_tiles = pl.cdiv(M, tm_eff)

    # No pad, no cast: ragged last tile is masked by Pallas; cast happens
    # in-kernel on the VPU.
    x2d = features.reshape(M, H)
    w1c = w1.astype(compute_dtype)
    w2c = w2.astype(compute_dtype)
    b1r = b1.reshape(1, H).astype(jnp.float32)
    b2r = b2.reshape(1, L).astype(jnp.float32)

    out_dtype = features.dtype

    # VMEM footprint: double-buffered x/out + resident weights + f32 temps.
    bx = jnp.dtype(features.dtype).itemsize
    bc = jnp.dtype(compute_dtype).itemsize
    bo = jnp.dtype(out_dtype).itemsize
    est = (2 * tm_eff * H * bx                     # x double buffer
           + H * H * bc + H * L * bc + (H + L) * 4  # resident weights/biases
           + 2 * tm_eff * L * bo                   # out double buffer
           + 2 * tm_eff * max(H, L) * 4)           # f32 intermediates
    # Smallest default scoped-VMEM limit across generations is 16 MiB (v5e);
    # raise only when needed, and cap at 48 MiB (headroom under v7x's 64 MiB).
    vmem_limit = None
    if est > 12 * 1024 * 1024:
        vmem_limit = int(min(max(2 * est, 16 * 1024 * 1024), 48 * 1024 * 1024))

    out2d = pl.pallas_call(
        regression_head_kernel,
        out_shape=jax.ShapeDtypeStruct((M, L), out_dtype),
        grid=(num_tiles,),
        in_specs=[
            pl.BlockSpec((tm_eff, H), lambda i: (i, 0)),   # x: streamed rows
            pl.BlockSpec((H, H), lambda i: (0, 0)),        # w1: resident
            pl.BlockSpec((1, H), lambda i: (0, 0)),        # b1: resident
            pl.BlockSpec((H, L), lambda i: (0, 0)),        # w2: resident
            pl.BlockSpec((1, L), lambda i: (0, 0)),        # b2: resident
        ],
        out_specs=pl.BlockSpec((tm_eff, L), lambda i: (i, 0)),
        compiler_params=pltpu.CompilerParams(
            dimension_semantics=("parallel",),
            vmem_limit_bytes=vmem_limit),
    )(x2d, w1c, b1r, w2c, b2r)

    return out2d.reshape(B, T, L)


if __name__ == "__main__":
    def ref_bf16(feats, w1, b1, w2, b2):
        B, T, H = feats.shape
        L = w2.shape[1]
        xb = feats.reshape(-1, H).astype(jnp.bfloat16)
        h = jnp.tanh(jnp.dot(xb, w1.astype(jnp.bfloat16),
                             preferred_element_type=jnp.float32) + b1)
        y = jnp.dot(h.astype(jnp.bfloat16), w2.astype(jnp.bfloat16),
                    preferred_element_type=jnp.float32) + b2
        return y.reshape(B, T, L)

    def ref_f32(feats, w1, b1, w2, b2):
        B, T, H = feats.shape
        L = w2.shape[1]
        x = feats.reshape(-1, H)
        return (jnp.tanh(x @ w1 + b1) @ w2 + b2).reshape(B, T, L)

    # config: hidden_size=32, num_labels=4, final_dropout (identity in eval)
    H, L = 32, 4
    key = jax.random.PRNGKey(0)
    k_w1, k_b1, k_w2, k_b2, k_x1, k_x2 = jax.random.split(key, 6)

    # Deterministic params (shapes match nn.Linear(H,H) / nn.Linear(H,L)),
    # stored pre-transposed as [in, out] for x @ W.
    w1 = jax.random.normal(k_w1, (H, H), dtype=jnp.float32) * (1.0 / jnp.sqrt(H))
    b1 = jax.random.normal(k_b1, (H,), dtype=jnp.float32) * 0.01
    w2 = jax.random.normal(k_w2, (H, L), dtype=jnp.float32) * (1.0 / jnp.sqrt(H))
    b2 = jax.random.normal(k_b2, (L,), dtype=jnp.float32) * 0.01

    # Primary config: batch=2, seq=8 (single full tile).
    f1 = jax.random.normal(k_x1, (2, 8, H), dtype=jnp.float32)
    # Ragged-grid config: M=21 -> two 16-row tiles with a masked boundary tile.
    f2 = jax.random.normal(k_x2, (3, 7, H), dtype=jnp.float32)

    for feats in (f1, f2):
        out = jax.block_until_ready(regression_head(feats, w1, b1, w2, b2))
        assert out.shape == feats.shape[:2] + (L,)

        # Reference 1: plain JAX, matching bf16 MXU operands / f32 accumulation.
        r_bf = ref_bf16(feats, w1, b1, w2, b2)
        assert jnp.allclose(out, r_bf, atol=1e-4, rtol=1e-4), \
            float(jnp.max(jnp.abs(out - r_bf)))

        # Reference 2: full-f32 math, looser tolerance (bf16 operand rounding).
        r_32 = ref_f32(feats, w1, b1, w2, b2)
        assert jnp.allclose(out, r_32, atol=5e-2, rtol=5e-2), \
            float(jnp.max(jnp.abs(out - r_32)))

    print("KERNEL_OK")
</pallas_src>

<mosaic_0001>
module attributes {stable_mosaic.version = 11 : i64} {
  func.func @regression_head_kernel(%arg0: i32, %arg1: memref<16x32xf32, #tpu.memory_space<vmem>>, %arg2: memref<32x32xbf16, #tpu.memory_space<vmem>>, %arg3: memref<1x32xf32, #tpu.memory_space<vmem>>, %arg4: memref<32x4xbf16, #tpu.memory_space<vmem>>, %arg5: memref<1x4xf32, #tpu.memory_space<vmem>>, %arg6: memref<16x4xf32, #tpu.memory_space<vmem>>) attributes {dimension_semantics = [#tpu.dimension_semantics<parallel>], iteration_bounds = array<i64: 1>, scalar_prefetch = 0 : i64, scratch_operands = 0 : i64, tpu.core_type = #tpu.core_type<tc>, window_params = [{transform_indices = @transform_0, window_bounds = array<i64: 16, 32>}, {pipeline_mode = #tpu.pipeline_mode<synchronous>, transform_indices = @transform_1, window_bounds = array<i64: 32, 32>}, {pipeline_mode = #tpu.pipeline_mode<synchronous>, transform_indices = @transform_2, window_bounds = array<i64: 1, 32>}, {pipeline_mode = #tpu.pipeline_mode<synchronous>, transform_indices = @transform_3, window_bounds = array<i64: 32, 4>}, {pipeline_mode = #tpu.pipeline_mode<synchronous>, transform_indices = @transform_4, window_bounds = array<i64: 1, 4>}, {transform_indices = @transform_5, window_bounds = array<i64: 16, 4>}]} {
    %c0 = arith.constant 0 : index
    %c0_0 = arith.constant 0 : index
    %0 = vector.load %arg1[%c0, %c0_0] : memref<16x32xf32, #tpu.memory_space<vmem>>, vector<16x32xf32>
    %1 = arith.truncf %0 : vector<16x32xf32> to vector<16x32xbf16>
    %c0_1 = arith.constant 0 : index
    %c0_2 = arith.constant 0 : index
    %2 = vector.load %arg2[%c0_1, %c0_2] : memref<32x32xbf16, #tpu.memory_space<vmem>>, vector<32x32xbf16>
    %cst = arith.constant dense<0.000000e+00> : vector<16x32xf32>
    %3 = tpu.matmul %1, %2, %cst {dimension_numbers = #tpu.dot_dimension_numbers<[1], [0], [0], [1], [0, 0, 1, 1], [], []>} : vector<16x32xbf16>, vector<32x32xbf16>, vector<16x32xf32> -> vector<16x32xf32>
    %c0_3 = arith.constant 0 : index
    %c0_4 = arith.constant 0 : index
    %4 = vector.load %arg3[%c0_3, %c0_4] : memref<1x32xf32, #tpu.memory_space<vmem>>, vector<1x32xf32>
    %5 = vector.broadcast %4 : vector<1x32xf32> to vector<16x32xf32>
    %6 = arith.addf %3, %5 : vector<16x32xf32>
    %7 = math.tanh %6 : vector<16x32xf32>
    %8 = arith.truncf %7 : vector<16x32xf32> to vector<16x32xbf16>
    %c0_5 = arith.constant 0 : index
    %c0_6 = arith.constant 0 : index
    %9 = vector.load %arg4[%c0_5, %c0_6] : memref<32x4xbf16, #tpu.memory_space<vmem>>, vector<32x4xbf16>
    %cst_7 = arith.constant dense<0.000000e+00> : vector<16x4xf32>
    %10 = tpu.matmul %8, %9, %cst_7 {dimension_numbers = #tpu.dot_dimension_numbers<[1], [0], [0], [1], [0, 0, 1, 1], [], []>} : vector<16x32xbf16>, vector<32x4xbf16>, vector<16x4xf32> -> vector<16x4xf32>
    %c0_8 = arith.constant 0 : index
    %c0_9 = arith.constant 0 : index
    %11 = vector.load %arg5[%c0_8, %c0_9] : memref<1x4xf32, #tpu.memory_space<vmem>>, vector<1x4xf32>
    %12 = vector.broadcast %11 : vector<1x4xf32> to vector<16x4xf32>
    %13 = arith.addf %10, %12 : vector<16x4xf32>
    %c0_10 = arith.constant 0 : index
    %c0_11 = arith.constant 0 : index
    %14 = vector.load %arg6[%c0_10, %c0_11] : memref<16x4xf32, #tpu.memory_space<vmem>>, vector<16x4xf32>
    tpu.vector_store %arg6[%c0_10, %c0_11], %13 {strides = array<i32>} : memref<16x4xf32, #tpu.memory_space<vmem>>, vector<16x4xf32>,
    return
  }
  func.func @transform_0(%arg0: i32) -> (i32, i32) {
    %c0_i32 = arith.constant 0 : i32
    %c0_i32_0 = arith.constant 0 : i32
    return %arg0, %c0_i32 : i32, i32
  }
  func.func @transform_1(%arg0: i32) -> (i32, i32) {
    %c0_i32 = arith.constant 0 : i32
    %c0_i32_0 = arith.constant 0 : i32
    %c0_i32_1 = arith.constant 0 : i32
    return %c0_i32, %c0_i32_0 : i32, i32
  }
  func.func @transform_2(%arg0: i32) -> (i32, i32) {
    %c0_i32 = arith.constant 0 : i32
    %c0_i32_0 = arith.constant 0 : i32
    %c0_i32_1 = arith.constant 0 : i32
    return %c0_i32, %c0_i32_0 : i32, i32
  }
  func.func @transform_3(%arg0: i32) -> (i32, i32) {
    %c0_i32 = arith.constant 0 : i32
    %c0_i32_0 = arith.constant 0 : i32
    %c0_i32_1 = arith.constant 0 : i32
    return %c0_i32, %c0_i32_0 : i32, i32
  }
  func.func @transform_4(%arg0: i32) -> (i32, i32) {
    %c0_i32 = arith.constant 0 : i32
    %c0_i32_0 = arith.constant 0 : i32
    %c0_i32_1 = arith.constant 0 : i32
    return %c0_i32, %c0_i32_0 : i32, i32
  }
  func.func @transform_5(%arg0: i32) -> (i32, i32) {
    %c0_i32 = arith.constant 0 : i32
    %c0_i32_0 = arith.constant 0 : i32
    return %arg0, %c0_i32 : i32, i32
  }
}

</mosaic_0001>

<llo_original>
// kernel: tpu_custom_call.1
$region0: #{tpu_custom_call.1}
  #allocation0 [shape = 'u32[]', space=smem, size = 0x4, offset = 0x4, fixed_abs, tag = 'smem constant byte address 0x4 - core index']
  #allocation1 [shape = 'u32[144,128]{1,0:T(1,128)}', space=vmem, size = 0x12000, scoped, tag = 'internal scratch']
  %s0 = inlined_call_operand.vmem [shape: f32[16,32], index: 0, kind: input, shape index: {}]
  %s1 = inlined_call_operand.hbm [shape: bf16[32,32], index: 1, kind: input, shape index: {}]
  %s2 = inlined_call_operand.vmem [shape: f32[1,32], index: 2, kind: input, shape index: {}]
  %s3 = inlined_call_operand.vmem [shape: bf16[32,4], index: 3, kind: input, shape index: {}]
  %s4 = inlined_call_operand.vmem [shape: f32[1,4], index: 4, kind: input, shape index: {}]
  %s5 = inlined_call_operand.vmem [shape: f32[16,4], index: 5, kind: output, shape index: {}]
  %s6 = sld [smem:[#allocation0]]
  $region34: #{tpu_custom_call.1} parent=0
    _
  %s8 = ssub.s32 1, %s6
  %s9 = scalar_select 0, %s8, %s6
  $region1: #{tpu_custom_call.1} parent=0
    #allocation2 [shape = 'u8[8192]{0}', space=vmem, size = 0x2000, scoped, tag = 'input window, operand 1, single buffered']
    #allocation3 [shape = 's32[1]{0}', space=sflag, size = 0x4, scoped, tag = 'scoped memory for tpu_custom_call.1']
    %10 = vsyncpa [#allocation3], 0
    // Predicated region
    $region2: #{tpu_custom_call.1} parent=1 // pred_check
      _
    $region3: #{tpu_custom_call.1} parent=1 // pred_check_branch
      %12 = sbr.rel (0) target = $region5
    $region4: #{tpu_custom_call.1} parent=1 // pred_region
      _
    $region5: #{tpu_custom_call.1} parent=1 // pred_fallthru
      _
    // Predicated region
    $region6: #{tpu_custom_call.1} parent=1 // pred_check
      _
    $region7: #{tpu_custom_call.1} parent=1 // pred_check_branch
      %14 = sbr.rel (0) target = $region9
    $region8: #{tpu_custom_call.1} parent=1 // pred_region
      %s16 = ssub.s32 256, 256
      %17 = vsyncadd [#allocation3], %s16
      %s18 = sshll.u32 [#allocation2], 4
      %s19 = int_to_ptr.vmem [resolvable:$true] %s18
      %24 = dma.hbm_to_vmem [thread:$0]  %s1, 256, %s19, [#allocation3], 64, 64, 4
    $region9: #{tpu_custom_call.1} parent=1 // pred_fallthru
      _
    // Predicated region
    $region10: #{tpu_custom_call.1} parent=1 // pred_check
      _
    $region11: #{tpu_custom_call.1} parent=1 // pred_check_branch
      %26 = sbr.rel (0) target = $region13
    $region12: #{tpu_custom_call.1} parent=1 // pred_region
      _
    $region13: #{tpu_custom_call.1} parent=1 // pred_fallthru
      _
    // Predicated region
    $region14: #{tpu_custom_call.1} parent=1 // pred_check
      _
    $region15: #{tpu_custom_call.1} parent=1 // pred_check_branch
      %28 = sbr.rel (0) target = $region17
    $region16: #{tpu_custom_call.1} parent=1 // pred_region
      _
    $region17: #{tpu_custom_call.1} parent=1 // pred_fallthru
      _
    // Predicated region
    $region18: #{tpu_custom_call.1} parent=1 // pred_check
      _
    $region19: #{tpu_custom_call.1} parent=1 // pred_check_branch
      %30 = sbr.rel (0) target = $region21
    $region20: #{tpu_custom_call.1} parent=1 // pred_region
      _
    $region21: #{tpu_custom_call.1} parent=1 // pred_fallthru
      _
    // Predicated region
    $region22: #{tpu_custom_call.1} parent=1 // pred_check
      _
    $region23: #{tpu_custom_call.1} parent=1 // pred_check_branch
      %32 = sbr.rel (0) target = $region25
    $region24: #{tpu_custom_call.1} parent=1 // pred_region
      %33 = dma.done [#allocation3], 256
    $region25: #{tpu_custom_call.1} parent=1 // pred_fallthru
      _
    %v35 = vld [vmem:[%s0] sm:$0xff]
    %v36 = vld [vmem:[%s0 + $0x8] sm:$0xff]
    %v37 = vpack.c.bf16 %v36, %v35
    %v38 = vld [vmem:[#allocation2] sm:$0xf]
    %v39 = vld [vmem:[#allocation2 + $0x4] sm:$0xf]
    %v40 = vld [vmem:[#allocation2 + $0x8] sm:$0xf]
    %v41 = vld [vmem:[#allocation2 + $0xc] sm:$0xf]
    %v42 = vld [vmem:[%s2] sm:$0x1]
    %v44 = vlaneseq
    %v45 = vshrl.u32 %v44, 7
    %v46 = vsub.s32 0, %v45
    %v47 = vrot.slane %v42, %v46
    %v53 = vunpack.c.l.b16 %v38
    %v54 = vunpack.c.l.b16 %v39
    %v55 = vunpack.c.l.b16 %v40
    %v56 = vunpack.c.l.b16 %v41
    %v57 = vpack.c.b16 %v54, %v53
    %v58 = vpack.c.b16 %v56, %v55
    %vm61 = vcmask 261120
    %v63 = vsel %vm61, %v37, 0
    %65 = vmatprep.subr.bf16.mxu0 0
    %66 = vmatpush1.bf16.msra.mxu0 %v57
    %67 = vmatprep.subr.bf16.mxu0 0
    %68 = vmatpush1.bf16.msra.mxu0 %v58
    %69 = vmatprep.subr.bf16.mxu0 0
    %70 = vmatpush1.bf16.msra.mxu0 0
    %71 = vmatprep.subr.bf16.mxu0 0
    %72 = vmatpush1.bf16.msra.mxu0 0
    %73 = vmatprep.subr.bf16.mxu0 0
    %74 = vmatpush1.bf16.msra.mxu0 0
    %75 = vmatprep.subr.bf16.mxu0 0
    %76 = vmatpush1.bf16.msra.mxu0 0
    %77 = vmatprep.subr.bf16.mxu0 0
    %78 = vmatpush1.bf16.msra.mxu0 0
    %79 = vmatprep.subr.bf16.mxu0 0
    %80 = vmatpush1.bf16.msra.mxu0 0
    %81 = vmatprep.subr.bf16.mxu0 0
    %82 = vmatpush1.bf16.msra.mxu0 0
    %83 = vmatprep.subr.bf16.mxu0 0
    %84 = vmatpush1.bf16.msra.mxu0 0
    %85 = vmatprep.subr.bf16.mxu0 0
    %86 = vmatpush1.bf16.msra.mxu0 0
    %87 = vmatprep.subr.bf16.mxu0 0
    %88 = vmatpush1.bf16.msra.mxu0 0
    %89 = vmatprep.subr.bf16.mxu0 0
    %90 = vmatpush1.bf16.msra.mxu0 0
    %91 = vmatprep.subr.bf16.mxu0 0
    %92 = vmatpush1.bf16.msra.mxu0 0
    %93 = vmatprep.subr.bf16.mxu0 0
    %94 = vmatpush1.bf16.msra.mxu0 0
    %95 = vmatprep.subr.bf16.mxu0 0
    %96 = vmatpush1.bf16.msra.mxu0 0
    %97 = vmatprep.mubr.bf16.mxu0 0
    %98 = vmatmul.mubr.bf16.gmra.mrb[0].mxu0 %v63
    %v99 = vpop.f32.mrb[0].mxu0
    %v100 = vadd.f32 %v47, %v99
    %v101 = vpop.f32.mrb[0].mxu0
    %v102 = vpop.f32.mrb[0].mxu0
    %v103 = vadd.f32 %v47, %v102
    %v104 = vpop.f32.mrb[0].mxu0
    %105 = vdwg.mxu0
    %v106 = vtanh.pop %v100
    %v107 = vtanh.pop %v103
    %v108 = vpack.c.bf16 %v107, %v106
    %v109 = vld [vmem:[%s3] sm:$0xf]
    %v110 = vld [vmem:[%s3 + $0x4] sm:$0xf]
    %v111 = vld [vmem:[%s3 + $0x8] sm:$0xf]
    %v112 = vld [vmem:[%s3 + $0xc] sm:$0xf]
    %v113 = vld [vmem:[%s4] sm:$0x1]
    %v115 = vlaneseq
    %v116 = vshrl.u32 %v115, 7
    %v117 = vsub.s32 0, %v116
    %v118 = vrot.slane %v113, %v117
    %v124 = vunpack.c.l.b16 %v109
    %v125 = vunpack.c.l.b16 %v110
    %v126 = vunpack.c.l.b16 %v111
    %v127 = vunpack.c.l.b16 %v112
    %v128 = vpack.c.b16 %v125, %v124
    %v129 = vpack.c.b16 %v127, %v126
    %v133 = vsel %vm61, %v108, 0
    %135 = vmatprep.subr.bf16.mxu0 0
    %136 = vmatpush1.bf16.msra.mxu0 %v128
    %137 = vmatprep.subr.bf16.mxu0 0
    %138 = vmatpush1.bf16.msra.mxu0 %v129
    %139 = vmatprep.subr.bf16.mxu0 0
    %140 = vmatpush1.bf16.msra.mxu0 0
    %141 = vmatprep.subr.bf16.mxu0 0
    %142 = vmatpush1.bf16.msra.mxu0 0
    %143 = vmatprep.subr.bf16.mxu0 0
    %144 = vmatpush1.bf16.msra.mxu0 0
    %145 = vmatprep.subr.bf16.mxu0 0
    %146 = vmatpush1.bf16.msra.mxu0 0
    %147 = vmatprep.subr.bf16.mxu0 0
    %148 = vmatpush1.bf16.msra.mxu0 0
    %149 = vmatprep.subr.bf16.mxu0 0
    %150 = vmatpush1.bf16.msra.mxu0 0
    %151 = vmatprep.subr.bf16.mxu0 0
    %152 = vmatpush1.bf16.msra.mxu0 0
    %153 = vmatprep.subr.bf16.mxu0 0
    %154 = vmatpush1.bf16.msra.mxu0 0
    %155 = vmatprep.subr.bf16.mxu0 0
    %156 = vmatpush1.bf16.msra.mxu0 0
    %157 = vmatprep.subr.bf16.mxu0 0
    %158 = vmatpush1.bf16.msra.mxu0 0
    %159 = vmatprep.subr.bf16.mxu0 0
    %160 = vmatpush1.bf16.msra.mxu0 0
    %161 = vmatprep.subr.bf16.mxu0 0
    %162 = vmatpush1.bf16.msra.mxu0 0
    %163 = vmatprep.subr.bf16.mxu0 0
    %164 = vmatpush1.bf16.msra.mxu0 0
    %165 = vmatprep.subr.bf16.mxu0 0
    %166 = vmatpush1.bf16.msra.mxu0 0
    %167 = vmatprep.mubr.bf16.mxu0 0
    %168 = vmatmul.mubr.bf16.gmra.mrb[0].mxu0 %v133
    %v169 = vpop.f32.mrb[0].mxu0
    %v170 = vadd.f32 %v118, %v169
    %v171 = vpop.f32.mrb[0].mxu0
    %v172 = vpop.f32.mrb[0].mxu0
    %v173 = vadd.f32 %v118, %v172
    %v174 = vpop.f32.mrb[0].mxu0
    %175 = vdwg.mxu0
    %vm176 = vcmask 31744
    %177 = vst.msk [vmem:[%s5] sm:$0xff] %vm176, %v170
    %178 = vst.msk [vmem:[%s5 + $0x8] sm:$0xff] %vm176, %v173
    // Predicated region
    $region26: #{tpu_custom_call.1} parent=1 // pred_check
      _
    $region27: #{tpu_custom_call.1} parent=1 // pred_check_branch
      %180 = sbr.rel (0) target = $region29
    $region28: #{tpu_custom_call.1} parent=1 // pred_region
      _
    $region29: #{tpu_custom_call.1} parent=1 // pred_fallthru
      _
    // Predicated region
    $region30: #{tpu_custom_call.1} parent=1 // pred_check
      _
    $region31: #{tpu_custom_call.1} parent=1 // pred_check_branch
      %182 = sbr.rel (0) target = $region33
    $region32: #{tpu_custom_call.1} parent=1 // pred_region
      _
    $region33: #{tpu_custom_call.1} parent=1 // pred_fallthru
      _
    %183 = vsyncpa [#allocation3], 1

</llo_original>
